<compile_context>
chip_gen: v5e
topology: v5e:2x2
jax: 0.10.0
libtpu: 0.0.40
codegen_flags: <defaults>
</compile_context>

<pallas_src>
import functools

import jax
import jax.numpy as jnp
from jax import lax
from jax.experimental import pallas as pl
from jax.experimental.pallas import tpu as pltpu


# ----------------------------- Pallas kernel -------------------------------
def blstm_kernel(T, B, H,
                 x_ref,                            # (T*B, I) time-major, flattened
                 wih_f_ref, whh_f_ref, b_f_ref,    # (I,4H) (H,4H) (1,4H)
                 wih_b_ref, b_b_ref,               # (I,4H) (1,4H)
                 w_top_ref, w_bot_ref, b_head_ref,  # (H,1) (H,1) (1,1)
                 o_ref):                           # (B, 1) output
    # ---- Hoisted input projection: all T steps in one MXU matmul -----------
    # Bias folded in here; the result stays in vregs (T*B x 4H is tiny), so
    # the recurrence below touches no scratch memory at all.
    pre = (jnp.dot(x_ref[...], wih_f_ref[...],
                   preferred_element_type=jnp.float32) + b_f_ref[...])
    whh = whh_f_ref[...]                      # hoist weight load out of the loop

    h = jnp.zeros((B, H), jnp.float32)
    c = jnp.zeros((B, H), jnp.float32)

    # ---- Forward recurrence: one matmul per step on the serial chain -------
    # Fully unrolled (T static & small) with static sublane slices of `pre`.
    for t in range(T):
        gates = pre[t * B:(t + 1) * B, :] + jnp.dot(
            h, whh, preferred_element_type=jnp.float32)        # (B, 4H)
        sg = jax.nn.sigmoid(gates)             # one full-width EUP pass
        tg = jnp.tanh(gates)                   # one full-width EUP pass
        i = sg[:, 0 * H:1 * H]
        f = sg[:, 1 * H:2 * H]
        g = tg[:, 2 * H:3 * H]
        o = sg[:, 3 * H:4 * H]
        c = f * c + i * g
        h = o * jnp.tanh(c)
    h_f = h

    # ---- Reverse direction: one cell step on x[T-1] from zero state --------
    # h0 == 0 and c0 == 0, so the h @ W_hh_b matmul and the f*c term vanish.
    x_last = x_ref[(T - 1) * B:T * B, :]                          # static slice
    gates_b = (jnp.dot(x_last, wih_b_ref[...],
                       preferred_element_type=jnp.float32)
               + b_b_ref[...])
    sg_b = jax.nn.sigmoid(gates_b)
    tg_b = jnp.tanh(gates_b)
    c_b = sg_b[:, 0 * H:1 * H] * tg_b[:, 2 * H:3 * H]             # i * g
    h_b = sg_b[:, 3 * H:4 * H] * jnp.tanh(c_b)                    # o * tanh(c)

    # ---- Fused (activation-free) Linear->Linear head, split per direction --
    pred = (jnp.dot(h_f, w_top_ref[...], preferred_element_type=jnp.float32)
            + jnp.dot(h_b, w_bot_ref[...], preferred_element_type=jnp.float32)
            + b_head_ref[...])
    o_ref[...] = pred.astype(o_ref.dtype)


# ------------------------------- wrapper ------------------------------------
def blstm_forward(x, p):
    """x: (B, T, I) float32, batch_first like the PyTorch module."""
    B, T, I = x.shape
    H = p["whh_f"].shape[1]                 # whh stored PyTorch-style (4H, H)

    # Time-major, flattened so the whole input projection is one matmul.
    x_flat = jnp.transpose(x, (1, 0, 2)).reshape(T * B, I)

    # Fuse the two output Linears (no nonlinearity between them):
    #   pred = (feat @ w_fcn.T + b_fcn) @ w_out.T + b_out
    #        = feat @ (w_fcn.T @ w_out.T) + (b_fcn @ w_out.T + b_out)
    w_head = p["w_fcn"].T @ p["w_out"].T                 # (2H, 1)
    b_head = p["b_fcn"] @ p["w_out"].T + p["b_out"]      # (1,)

    args = (
        x_flat,
        # forward direction: pre-transposed (in, out), LSTM biases pre-summed
        p["wih_f"].T, p["whh_f"].T, (p["bih_f"] + p["bhh_f"])[None, :],
        # reverse direction: only W_ih + bias needed (zero initial state)
        p["wih_b"].T, (p["bih_b"] + p["bhh_b"])[None, :],
        # fused head, split per direction (no concatenate in the kernel)
        w_head[:H], w_head[H:], b_head[None, :],
    )

    vmem = pl.BlockSpec(memory_space=pltpu.MemorySpace.VMEM)
    kernel = functools.partial(blstm_kernel, T, B, H)
    return pl.pallas_call(
        kernel,
        out_shape=jax.ShapeDtypeStruct((B, 1), jnp.float32),
        in_specs=[vmem] * len(args),
        out_specs=vmem,
    )(*args)


# --------------------------- deterministic params ---------------------------
def init_params(key, I, H, F):
    ks = iter(jax.random.split(key, 16))

    def u(shape, scale):
        return jax.random.uniform(next(ks), shape, jnp.float32, -scale, scale)

    k_lstm = 1.0 / (H ** 0.5)
    k_fcn = 1.0 / ((2 * H) ** 0.5)
    k_out = 1.0 / (F ** 0.5)
    return {
        # forward direction (PyTorch weight_ih_l0 / weight_hh_l0 shapes)
        "wih_f": u((4 * H, I), k_lstm), "whh_f": u((4 * H, H), k_lstm),
        "bih_f": u((4 * H,), k_lstm),   "bhh_f": u((4 * H,), k_lstm),
        # reverse direction
        "wih_b": u((4 * H, I), k_lstm), "whh_b": u((4 * H, H), k_lstm),
        "bih_b": u((4 * H,), k_lstm),   "bhh_b": u((4 * H,), k_lstm),
        # fcn: Linear(2H, F); out: Linear(F, 1)
        "w_fcn": u((F, 2 * H), k_fcn),  "b_fcn": u((F,), k_fcn),
        "w_out": u((1, F), k_out),      "b_out": u((1,), k_out),
    }


# ----------------------------- pure-JAX reference ---------------------------
def reference_forward(x, p):
    B, T, I = x.shape
    H = p["whh_f"].shape[1]

    def cell(carry, xt, wih, whh, bih, bhh):
        h, c = carry
        gates = xt @ wih.T + bih + h @ whh.T + bhh
        i, f, g, o = jnp.split(gates, 4, axis=-1)
        i, f, o = jax.nn.sigmoid(i), jax.nn.sigmoid(f), jax.nn.sigmoid(o)
        g = jnp.tanh(g)
        c = f * c + i * g
        h = o * jnp.tanh(c)
        return (h, c), h

    h0 = jnp.zeros((B, H), jnp.float32)
    c0 = jnp.zeros((B, H), jnp.float32)
    xs = jnp.transpose(x, (1, 0, 2))                         # (T, B, I)

    _, hs_f = lax.scan(lambda cr, xt: cell(cr, xt, p["wih_f"], p["whh_f"],
                                           p["bih_f"], p["bhh_f"]), (h0, c0), xs)
    _, hs_b = lax.scan(lambda cr, xt: cell(cr, xt, p["wih_b"], p["whh_b"],
                                           p["bih_b"], p["bhh_b"]), (h0, c0), xs[::-1])
    hs_b = hs_b[::-1]
    lstm_out_last = jnp.concatenate([hs_f[-1], hs_b[-1]], axis=-1)   # (B, 2H)
    fcn = lstm_out_last @ p["w_fcn"].T + p["b_fcn"]
    return fcn @ p["w_out"].T + p["b_out"]


# --------------------------------- main --------------------------------------
if __name__ == "__main__":
    B, T, I, H, F = 2, 8, 16, 32, 32     # batch, seq, lstm_input, lstm_hidden, fcn_hidden

    key = jax.random.PRNGKey(0)
    kx, kp = jax.random.split(key)
    x = jax.random.normal(kx, (B, T, I), jnp.float32)
    params = init_params(kp, I, H, F)

    pred = jax.jit(blstm_forward)(x, params)
    pred = jax.block_until_ready(pred)

    ref = reference_forward(x, params)
    assert pred.shape == (B, 1)
    assert jnp.allclose(pred, ref, atol=1e-3, rtol=1e-3), (pred, ref)

    print("KERNEL_OK")
</pallas_src>

<mosaic_0001>
module attributes {stable_mosaic.version = 11 : i64} {
  func.func @blstm_kernel(%arg0: memref<16x16xf32, #tpu.memory_space<vmem>>, %arg1: memref<16x128xf32, #tpu.memory_space<vmem>>, %arg2: memref<32x128xf32, #tpu.memory_space<vmem>>, %arg3: memref<1x128xf32, #tpu.memory_space<vmem>>, %arg4: memref<16x128xf32, #tpu.memory_space<vmem>>, %arg5: memref<1x128xf32, #tpu.memory_space<vmem>>, %arg6: memref<32x1xf32, #tpu.memory_space<vmem>>, %arg7: memref<32x1xf32, #tpu.memory_space<vmem>>, %arg8: memref<1x1xf32, #tpu.memory_space<vmem>>, %arg9: memref<2x1xf32, #tpu.memory_space<vmem>>) attributes {dimension_semantics = [], scalar_prefetch = 0 : i64, scratch_operands = 0 : i64, tpu.core_type = #tpu.core_type<tc>} {
    %c0 = arith.constant 0 : index
    %c0_0 = arith.constant 0 : index
    %0 = vector.load %arg0[%c0, %c0_0] : memref<16x16xf32, #tpu.memory_space<vmem>>, vector<16x16xf32>
    %c0_1 = arith.constant 0 : index
    %c0_2 = arith.constant 0 : index
    %1 = vector.load %arg1[%c0_1, %c0_2] : memref<16x128xf32, #tpu.memory_space<vmem>>, vector<16x128xf32>
    %cst = arith.constant dense<0.000000e+00> : vector<16x128xf32>
    %2 = tpu.matmul %0, %1, %cst {dimension_numbers = #tpu.dot_dimension_numbers<[1], [0], [0], [1], [0, 0, 1, 1], [], []>} : vector<16x16xf32>, vector<16x128xf32>, vector<16x128xf32> -> vector<16x128xf32>
    %c0_3 = arith.constant 0 : index
    %c0_4 = arith.constant 0 : index
    %3 = vector.load %arg3[%c0_3, %c0_4] : memref<1x128xf32, #tpu.memory_space<vmem>>, vector<1x128xf32>
    %4 = vector.broadcast %3 : vector<1x128xf32> to vector<16x128xf32>
    %5 = arith.addf %2, %4 : vector<16x128xf32>
    %c0_5 = arith.constant 0 : index
    %c0_6 = arith.constant 0 : index
    %6 = vector.load %arg2[%c0_5, %c0_6] : memref<32x128xf32, #tpu.memory_space<vmem>>, vector<32x128xf32>
    %cst_7 = arith.constant 0.000000e+00 : f32
    %7 = vector.broadcast %cst_7 : f32 to vector<2x32xf32>
    %cst_8 = arith.constant 0.000000e+00 : f32
    %8 = vector.broadcast %cst_8 : f32 to vector<2x32xf32>
    %9 = vector.extract_strided_slice %5 {offsets = [0, 0], sizes = [2, 128], strides = [1, 1]} : vector<16x128xf32> to vector<2x128xf32>
    %cst_9 = arith.constant dense<0.000000e+00> : vector<2x128xf32>
    %10 = tpu.matmul %7, %6, %cst_9 {dimension_numbers = #tpu.dot_dimension_numbers<[1], [0], [0], [1], [0, 0, 1, 1], [], []>} : vector<2x32xf32>, vector<32x128xf32>, vector<2x128xf32> -> vector<2x128xf32>
    %11 = arith.addf %9, %10 : vector<2x128xf32>
    %12 = arith.negf %11 : vector<2x128xf32>
    %13 = math.exp %12 : vector<2x128xf32>
    %cst_10 = arith.constant 1.000000e+00 : f32
    %14 = vector.broadcast %cst_10 : f32 to vector<2x128xf32>
    %15 = arith.addf %14, %13 : vector<2x128xf32>
    %16 = arith.divf %14, %15 : vector<2x128xf32>
    %17 = math.tanh %11 : vector<2x128xf32>
    %18 = vector.extract_strided_slice %16 {offsets = [0, 0], sizes = [2, 32], strides = [1, 1]} : vector<2x128xf32> to vector<2x32xf32>
    %19 = vector.extract_strided_slice %16 {offsets = [0, 32], sizes = [2, 32], strides = [1, 1]} : vector<2x128xf32> to vector<2x32xf32>
    %20 = vector.extract_strided_slice %17 {offsets = [0, 64], sizes = [2, 32], strides = [1, 1]} : vector<2x128xf32> to vector<2x32xf32>
    %21 = vector.extract_strided_slice %16 {offsets = [0, 96], sizes = [2, 32], strides = [1, 1]} : vector<2x128xf32> to vector<2x32xf32>
    %22 = arith.mulf %19, %8 : vector<2x32xf32>
    %23 = arith.mulf %18, %20 : vector<2x32xf32>
    %24 = arith.addf %22, %23 : vector<2x32xf32>
    %25 = math.tanh %24 : vector<2x32xf32>
    %26 = arith.mulf %21, %25 : vector<2x32xf32>
    %27 = vector.extract_strided_slice %5 {offsets = [2, 0], sizes = [2, 128], strides = [1, 1]} : vector<16x128xf32> to vector<2x128xf32>
    %cst_11 = arith.constant dense<0.000000e+00> : vector<2x128xf32>
    %28 = tpu.matmul %26, %6, %cst_11 {dimension_numbers = #tpu.dot_dimension_numbers<[1], [0], [0], [1], [0, 0, 1, 1], [], []>} : vector<2x32xf32>, vector<32x128xf32>, vector<2x128xf32> -> vector<2x128xf32>
    %29 = arith.addf %27, %28 : vector<2x128xf32>
    %30 = arith.negf %29 : vector<2x128xf32>
    %31 = math.exp %30 : vector<2x128xf32>
    %cst_12 = arith.constant 1.000000e+00 : f32
    %32 = vector.broadcast %cst_12 : f32 to vector<2x128xf32>
    %33 = arith.addf %32, %31 : vector<2x128xf32>
    %34 = arith.divf %32, %33 : vector<2x128xf32>
    %35 = math.tanh %29 : vector<2x128xf32>
    %36 = vector.extract_strided_slice %34 {offsets = [0, 0], sizes = [2, 32], strides = [1, 1]} : vector<2x128xf32> to vector<2x32xf32>
    %37 = vector.extract_strided_slice %34 {offsets = [0, 32], sizes = [2, 32], strides = [1, 1]} : vector<2x128xf32> to vector<2x32xf32>
    %38 = vector.extract_strided_slice %35 {offsets = [0, 64], sizes = [2, 32], strides = [1, 1]} : vector<2x128xf32> to vector<2x32xf32>
    %39 = vector.extract_strided_slice %34 {offsets = [0, 96], sizes = [2, 32], strides = [1, 1]} : vector<2x128xf32> to vector<2x32xf32>
    %40 = arith.mulf %37, %24 : vector<2x32xf32>
    %41 = arith.mulf %36, %38 : vector<2x32xf32>
    %42 = arith.addf %40, %41 : vector<2x32xf32>
    %43 = math.tanh %42 : vector<2x32xf32>
    %44 = arith.mulf %39, %43 : vector<2x32xf32>
    %45 = vector.extract_strided_slice %5 {offsets = [4, 0], sizes = [2, 128], strides = [1, 1]} : vector<16x128xf32> to vector<2x128xf32>
    %cst_13 = arith.constant dense<0.000000e+00> : vector<2x128xf32>
    %46 = tpu.matmul %44, %6, %cst_13 {dimension_numbers = #tpu.dot_dimension_numbers<[1], [0], [0], [1], [0, 0, 1, 1], [], []>} : vector<2x32xf32>, vector<32x128xf32>, vector<2x128xf32> -> vector<2x128xf32>
    %47 = arith.addf %45, %46 : vector<2x128xf32>
    %48 = arith.negf %47 : vector<2x128xf32>
    %49 = math.exp %48 : vector<2x128xf32>
    %cst_14 = arith.constant 1.000000e+00 : f32
    %50 = vector.broadcast %cst_14 : f32 to vector<2x128xf32>
    %51 = arith.addf %50, %49 : vector<2x128xf32>
    %52 = arith.divf %50, %51 : vector<2x128xf32>
    %53 = math.tanh %47 : vector<2x128xf32>
    %54 = vector.extract_strided_slice %52 {offsets = [0, 0], sizes = [2, 32], strides = [1, 1]} : vector<2x128xf32> to vector<2x32xf32>
    %55 = vector.extract_strided_slice %52 {offsets = [0, 32], sizes = [2, 32], strides = [1, 1]} : vector<2x128xf32> to vector<2x32xf32>
    %56 = vector.extract_strided_slice %53 {offsets = [0, 64], sizes = [2, 32], strides = [1, 1]} : vector<2x128xf32> to vector<2x32xf32>
    %57 = vector.extract_strided_slice %52 {offsets = [0, 96], sizes = [2, 32], strides = [1, 1]} : vector<2x128xf32> to vector<2x32xf32>
    %58 = arith.mulf %55, %42 : vector<2x32xf32>
    %59 = arith.mulf %54, %56 : vector<2x32xf32>
    %60 = arith.addf %58, %59 : vector<2x32xf32>
    %61 = math.tanh %60 : vector<2x32xf32>
    %62 = arith.mulf %57, %61 : vector<2x32xf32>
    %63 = vector.extract_strided_slice %5 {offsets = [6, 0], sizes = [2, 128], strides = [1, 1]} : vector<16x128xf32> to vector<2x128xf32>
    %cst_15 = arith.constant dense<0.000000e+00> : vector<2x128xf32>
    %64 = tpu.matmul %62, %6, %cst_15 {dimension_numbers = #tpu.dot_dimension_numbers<[1], [0], [0], [1], [0, 0, 1, 1], [], []>} : vector<2x32xf32>, vector<32x128xf32>, vector<2x128xf32> -> vector<2x128xf32>
    %65 = arith.addf %63, %64 : vector<2x128xf32>
    %66 = arith.negf %65 : vector<2x128xf32>
    %67 = math.exp %66 : vector<2x128xf32>
    %cst_16 = arith.constant 1.000000e+00 : f32
    %68 = vector.broadcast %cst_16 : f32 to vector<2x128xf32>
    %69 = arith.addf %68, %67 : vector<2x128xf32>
    %70 = arith.divf %68, %69 : vector<2x128xf32>
    %71 = math.tanh %65 : vector<2x128xf32>
    %72 = vector.extract_strided_slice %70 {offsets = [0, 0], sizes = [2, 32], strides = [1, 1]} : vector<2x128xf32> to vector<2x32xf32>
    %73 = vector.extract_strided_slice %70 {offsets = [0, 32], sizes = [2, 32], strides = [1, 1]} : vector<2x128xf32> to vector<2x32xf32>
    %74 = vector.extract_strided_slice %71 {offsets = [0, 64], sizes = [2, 32], strides = [1, 1]} : vector<2x128xf32> to vector<2x32xf32>
    %75 = vector.extract_strided_slice %70 {offsets = [0, 96], sizes = [2, 32], strides = [1, 1]} : vector<2x128xf32> to vector<2x32xf32>
    %76 = arith.mulf %73, %60 : vector<2x32xf32>
    %77 = arith.mulf %72, %74 : vector<2x32xf32>
    %78 = arith.addf %76, %77 : vector<2x32xf32>
    %79 = math.tanh %78 : vector<2x32xf32>
    %80 = arith.mulf %75, %79 : vector<2x32xf32>
    %81 = vector.extract_strided_slice %5 {offsets = [8, 0], sizes = [2, 128], strides = [1, 1]} : vector<16x128xf32> to vector<2x128xf32>
    %cst_17 = arith.constant dense<0.000000e+00> : vector<2x128xf32>
    %82 = tpu.matmul %80, %6, %cst_17 {dimension_numbers = #tpu.dot_dimension_numbers<[1], [0], [0], [1], [0, 0, 1, 1], [], []>} : vector<2x32xf32>, vector<32x128xf32>, vector<2x128xf32> -> vector<2x128xf32>
    %83 = arith.addf %81, %82 : vector<2x128xf32>
    %84 = arith.negf %83 : vector<2x128xf32>
    %85 = math.exp %84 : vector<2x128xf32>
    %cst_18 = arith.constant 1.000000e+00 : f32
    %86 = vector.broadcast %cst_18 : f32 to vector<2x128xf32>
    %87 = arith.addf %86, %85 : vector<2x128xf32>
    %88 = arith.divf %86, %87 : vector<2x128xf32>
    %89 = math.tanh %83 : vector<2x128xf32>
    %90 = vector.extract_strided_slice %88 {offsets = [0, 0], sizes = [2, 32], strides = [1, 1]} : vector<2x128xf32> to vector<2x32xf32>
    %91 = vector.extract_strided_slice %88 {offsets = [0, 32], sizes = [2, 32], strides = [1, 1]} : vector<2x128xf32> to vector<2x32xf32>
    %92 = vector.extract_strided_slice %89 {offsets = [0, 64], sizes = [2, 32], strides = [1, 1]} : vector<2x128xf32> to vector<2x32xf32>
    %93 = vector.extract_strided_slice %88 {offsets = [0, 96], sizes = [2, 32], strides = [1, 1]} : vector<2x128xf32> to vector<2x32xf32>
    %94 = arith.mulf %91, %78 : vector<2x32xf32>
    %95 = arith.mulf %90, %92 : vector<2x32xf32>
    %96 = arith.addf %94, %95 : vector<2x32xf32>
    %97 = math.tanh %96 : vector<2x32xf32>
    %98 = arith.mulf %93, %97 : vector<2x32xf32>
    %99 = vector.extract_strided_slice %5 {offsets = [10, 0], sizes = [2, 128], strides = [1, 1]} : vector<16x128xf32> to vector<2x128xf32>
    %cst_19 = arith.constant dense<0.000000e+00> : vector<2x128xf32>
    %100 = tpu.matmul %98, %6, %cst_19 {dimension_numbers = #tpu.dot_dimension_numbers<[1], [0], [0], [1], [0, 0, 1, 1], [], []>} : vector<2x32xf32>, vector<32x128xf32>, vector<2x128xf32> -> vector<2x128xf32>
    %101 = arith.addf %99, %100 : vector<2x128xf32>
    %102 = arith.negf %101 : vector<2x128xf32>
    %103 = math.exp %102 : vector<2x128xf32>
    %cst_20 = arith.constant 1.000000e+00 : f32
    %104 = vector.broadcast %cst_20 : f32 to vector<2x128xf32>
    %105 = arith.addf %104, %103 : vector<2x128xf32>
    %106 = arith.divf %104, %105 : vector<2x128xf32>
    %107 = math.tanh %101 : vector<2x128xf32>
    %108 = vector.extract_strided_slice %106 {offsets = [0, 0], sizes = [2, 32], strides = [1, 1]} : vector<2x128xf32> to vector<2x32xf32>
    %109 = vector.extract_strided_slice %106 {offsets = [0, 32], sizes = [2, 32], strides = [1, 1]} : vector<2x128xf32> to vector<2x32xf32>
    %110 = vector.extract_strided_slice %107 {offsets = [0, 64], sizes = [2, 32], strides = [1, 1]} : vector<2x128xf32> to vector<2x32xf32>
    %111 = vector.extract_strided_slice %106 {offsets = [0, 96], sizes = [2, 32], strides = [1, 1]} : vector<2x128xf32> to vector<2x32xf32>
    %112 = arith.mulf %109, %96 : vector<2x32xf32>
    %113 = arith.mulf %108, %110 : vector<2x32xf32>
    %114 = arith.addf %112, %113 : vector<2x32xf32>
    %115 = math.tanh %114 : vector<2x32xf32>
    %116 = arith.mulf %111, %115 : vector<2x32xf32>
    %117 = vector.extract_strided_slice %5 {offsets = [12, 0], sizes = [2, 128], strides = [1, 1]} : vector<16x128xf32> to vector<2x128xf32>
    %cst_21 = arith.constant dense<0.000000e+00> : vector<2x128xf32>
    %118 = tpu.matmul %116, %6, %cst_21 {dimension_numbers = #tpu.dot_dimension_numbers<[1], [0], [0], [1], [0, 0, 1, 1], [], []>} : vector<2x32xf32>, vector<32x128xf32>, vector<2x128xf32> -> vector<2x128xf32>
    %119 = arith.addf %117, %118 : vector<2x128xf32>
    %120 = arith.negf %119 : vector<2x128xf32>
    %121 = math.exp %120 : vector<2x128xf32>
    %cst_22 = arith.constant 1.000000e+00 : f32
    %122 = vector.broadcast %cst_22 : f32 to vector<2x128xf32>
    %123 = arith.addf %122, %121 : vector<2x128xf32>
    %124 = arith.divf %122, %123 : vector<2x128xf32>
    %125 = math.tanh %119 : vector<2x128xf32>
    %126 = vector.extract_strided_slice %124 {offsets = [0, 0], sizes = [2, 32], strides = [1, 1]} : vector<2x128xf32> to vector<2x32xf32>
    %127 = vector.extract_strided_slice %124 {offsets = [0, 32], sizes = [2, 32], strides = [1, 1]} : vector<2x128xf32> to vector<2x32xf32>
    %128 = vector.extract_strided_slice %125 {offsets = [0, 64], sizes = [2, 32], strides = [1, 1]} : vector<2x128xf32> to vector<2x32xf32>
    %129 = vector.extract_strided_slice %124 {offsets = [0, 96], sizes = [2, 32], strides = [1, 1]} : vector<2x128xf32> to vector<2x32xf32>
    %130 = arith.mulf %127, %114 : vector<2x32xf32>
    %131 = arith.mulf %126, %128 : vector<2x32xf32>
    %132 = arith.addf %130, %131 : vector<2x32xf32>
    %133 = math.tanh %132 : vector<2x32xf32>
    %134 = arith.mulf %129, %133 : vector<2x32xf32>
    %135 = vector.extract_strided_slice %5 {offsets = [14, 0], sizes = [2, 128], strides = [1, 1]} : vector<16x128xf32> to vector<2x128xf32>
    %cst_23 = arith.constant dense<0.000000e+00> : vector<2x128xf32>
    %136 = tpu.matmul %134, %6, %cst_23 {dimension_numbers = #tpu.dot_dimension_numbers<[1], [0], [0], [1], [0, 0, 1, 1], [], []>} : vector<2x32xf32>, vector<32x128xf32>, vector<2x128xf32> -> vector<2x128xf32>
    %137 = arith.addf %135, %136 : vector<2x128xf32>
    %138 = arith.negf %137 : vector<2x128xf32>
    %139 = math.exp %138 : vector<2x128xf32>
    %cst_24 = arith.constant 1.000000e+00 : f32
    %140 = vector.broadcast %cst_24 : f32 to vector<2x128xf32>
    %141 = arith.addf %140, %139 : vector<2x128xf32>
    %142 = arith.divf %140, %141 : vector<2x128xf32>
    %143 = math.tanh %137 : vector<2x128xf32>
    %144 = vector.extract_strided_slice %142 {offsets = [0, 0], sizes = [2, 32], strides = [1, 1]} : vector<2x128xf32> to vector<2x32xf32>
    %145 = vector.extract_strided_slice %142 {offsets = [0, 32], sizes = [2, 32], strides = [1, 1]} : vector<2x128xf32> to vector<2x32xf32>
    %146 = vector.extract_strided_slice %143 {offsets = [0, 64], sizes = [2, 32], strides = [1, 1]} : vector<2x128xf32> to vector<2x32xf32>
    %147 = vector.extract_strided_slice %142 {offsets = [0, 96], sizes = [2, 32], strides = [1, 1]} : vector<2x128xf32> to vector<2x32xf32>
    %148 = arith.mulf %145, %132 : vector<2x32xf32>
    %149 = arith.mulf %144, %146 : vector<2x32xf32>
    %150 = arith.addf %148, %149 : vector<2x32xf32>
    %151 = math.tanh %150 : vector<2x32xf32>
    %152 = arith.mulf %147, %151 : vector<2x32xf32>
    %c14 = arith.constant 14 : index
    %c0_25 = arith.constant 0 : index
    %153 = vector.load %arg0[%c14, %c0_25] : memref<16x16xf32, #tpu.memory_space<vmem>>, vector<2x16xf32>
    %c0_26 = arith.constant 0 : index
    %c0_27 = arith.constant 0 : index
    %154 = vector.load %arg4[%c0_26, %c0_27] : memref<16x128xf32, #tpu.memory_space<vmem>>, vector<16x128xf32>
    %cst_28 = arith.constant dense<0.000000e+00> : vector<2x128xf32>
    %155 = tpu.matmul %153, %154, %cst_28 {dimension_numbers = #tpu.dot_dimension_numbers<[1], [0], [0], [1], [0, 0, 1, 1], [], []>} : vector<2x16xf32>, vector<16x128xf32>, vector<2x128xf32> -> vector<2x128xf32>
    %c0_29 = arith.constant 0 : index
    %c0_30 = arith.constant 0 : index
    %156 = vector.load %arg5[%c0_29, %c0_30] : memref<1x128xf32, #tpu.memory_space<vmem>>, vector<1x128xf32>
    %157 = vector.broadcast %156 : vector<1x128xf32> to vector<2x128xf32>
    %158 = arith.addf %155, %157 : vector<2x128xf32>
    %159 = arith.negf %158 : vector<2x128xf32>
    %160 = math.exp %159 : vector<2x128xf32>
    %cst_31 = arith.constant 1.000000e+00 : f32
    %161 = vector.broadcast %cst_31 : f32 to vector<2x128xf32>
    %162 = arith.addf %161, %160 : vector<2x128xf32>
    %163 = arith.divf %161, %162 : vector<2x128xf32>
    %164 = math.tanh %158 : vector<2x128xf32>
    %165 = vector.extract_strided_slice %163 {offsets = [0, 0], sizes = [2, 32], strides = [1, 1]} : vector<2x128xf32> to vector<2x32xf32>
    %166 = vector.extract_strided_slice %164 {offsets = [0, 64], sizes = [2, 32], strides = [1, 1]} : vector<2x128xf32> to vector<2x32xf32>
    %167 = arith.mulf %165, %166 : vector<2x32xf32>
    %168 = vector.extract_strided_slice %163 {offsets = [0, 96], sizes = [2, 32], strides = [1, 1]} : vector<2x128xf32> to vector<2x32xf32>
    %169 = math.tanh %167 : vector<2x32xf32>
    %170 = arith.mulf %168, %169 : vector<2x32xf32>
    %c0_32 = arith.constant 0 : index
    %c0_33 = arith.constant 0 : index
    %171 = vector.load %arg6[%c0_32, %c0_33] : memref<32x1xf32, #tpu.memory_space<vmem>>, vector<32x1xf32>
    %cst_34 = arith.constant dense<0.000000e+00> : vector<2x1xf32>
    %172 = tpu.matmul %152, %171, %cst_34 {dimension_numbers = #tpu.dot_dimension_numbers<[1], [0], [0], [1], [0, 0, 1, 1], [], []>} : vector<2x32xf32>, vector<32x1xf32>, vector<2x1xf32> -> vector<2x1xf32>
    %c0_35 = arith.constant 0 : index
    %c0_36 = arith.constant 0 : index
    %173 = vector.load %arg7[%c0_35, %c0_36] : memref<32x1xf32, #tpu.memory_space<vmem>>, vector<32x1xf32>
    %cst_37 = arith.constant dense<0.000000e+00> : vector<2x1xf32>
    %174 = tpu.matmul %170, %173, %cst_37 {dimension_numbers = #tpu.dot_dimension_numbers<[1], [0], [0], [1], [0, 0, 1, 1], [], []>} : vector<2x32xf32>, vector<32x1xf32>, vector<2x1xf32> -> vector<2x1xf32>
    %175 = arith.addf %172, %174 : vector<2x1xf32>
    %c0_38 = arith.constant 0 : index
    %c0_39 = arith.constant 0 : index
    %176 = vector.load %arg8[%c0_38, %c0_39] : memref<1x1xf32, #tpu.memory_space<vmem>>, vector<1x1xf32>
    %177 = vector.broadcast %176 : vector<1x1xf32> to vector<2x1xf32>
    %178 = arith.addf %175, %177 : vector<2x1xf32>
    %c0_40 = arith.constant 0 : index
    %c0_41 = arith.constant 0 : index
    %179 = vector.load %arg9[%c0_40, %c0_41] : memref<2x1xf32, #tpu.memory_space<vmem>>, vector<2x1xf32>
    tpu.vector_store %arg9[%c0_40, %c0_41], %178 {strides = array<i32>} : memref<2x1xf32, #tpu.memory_space<vmem>>, vector<2x1xf32>,
    return
  }
}

</mosaic_0001>

<llo_original>
// kernel: blstm_forward.1
$region0: #{blstm_forward.1}
  #allocation0 [shape = 'u32[]', space=smem, size = 0x4, offset = 0x4, fixed_abs, tag = 'smem constant byte address 0x4 - core index']
  #allocation1 [shape = 'u32[72,128]{1,0:T(1,128)}', space=vmem, size = 0x9000, scoped, tag = 'internal scratch']
  #allocation2 [shape = 'f32[1,1]{1,0:T(1,128)S(1)}', space=vmem, size = 0x200, scoped, tag = 'scoped memory for blstm_forward.1']
  %s0 = inlined_call_operand.vmem [shape: f32[16,16], index: 0, kind: input, shape index: {}]
  %s1 = inlined_call_operand.vmem [shape: f32[16,128], index: 1, kind: input, shape index: {}]
  %s2 = inlined_call_operand.vmem [shape: f32[32,128], index: 2, kind: input, shape index: {}]
  %s3 = inlined_call_operand.vmem [shape: f32[1,128], index: 3, kind: input, shape index: {}]
  %s4 = inlined_call_operand.vmem [shape: f32[16,128], index: 4, kind: input, shape index: {}]
  %s5 = inlined_call_operand.vmem [shape: f32[1,128], index: 5, kind: input, shape index: {}]
  %s6 = inlined_call_operand.vmem [shape: f32[32,1], index: 6, kind: input, shape index: {}]
  %s7 = inlined_call_operand.vmem [shape: f32[32,1], index: 7, kind: input, shape index: {}]
  %s8 = inlined_call_operand.<no memory space> [shape: f32[1,1], index: 8, kind: input, shape index: {}]
  %s9 = inlined_call_operand.vmem [shape: f32[2,1], index: 9, kind: output, shape index: {}]
  %s10 = sld [smem:[#allocation0]]
  $region46: #{blstm_forward.1} parent=0
    _
  %s12 = ssub.s32 1, %s10
  %s13 = scalar_select 0, %s12, %s10
  %v14 = vstv %s8
  %15 = vst [vmem:[#allocation2] sm:$0x1] %v14
  // Predicated region
  $region2: #{blstm_forward.1} parent=0 // pred_check
    _
  $region3: #{blstm_forward.1} parent=0 // pred_check_branch
    %17 = sbr.rel (0) target = $region5
  $region4: #{blstm_forward.1} parent=0 // pred_region
    _
  $region5: #{blstm_forward.1} parent=0 // pred_fallthru
    _
  // Predicated region
  $region6: #{blstm_forward.1} parent=0 // pred_check
    _
  $region7: #{blstm_forward.1} parent=0 // pred_check_branch
    %19 = sbr.rel (0) target = $region9
  $region8: #{blstm_forward.1} parent=0 // pred_region
    _
  $region9: #{blstm_forward.1} parent=0 // pred_fallthru
    _
  // Predicated region
  $region10: #{blstm_forward.1} parent=0 // pred_check
    _
  $region11: #{blstm_forward.1} parent=0 // pred_check_branch
    %21 = sbr.rel (0) target = $region13
  $region12: #{blstm_forward.1} parent=0 // pred_region
    _
  $region13: #{blstm_forward.1} parent=0 // pred_fallthru
    _
  // Predicated region
  $region14: #{blstm_forward.1} parent=0 // pred_check
    _
  $region15: #{blstm_forward.1} parent=0 // pred_check_branch
    %23 = sbr.rel (0) target = $region17
  $region16: #{blstm_forward.1} parent=0 // pred_region
    _
  $region17: #{blstm_forward.1} parent=0 // pred_fallthru
    _
  // Predicated region
  $region18: #{blstm_forward.1} parent=0 // pred_check
    _
  $region19: #{blstm_forward.1} parent=0 // pred_check_branch
    %25 = sbr.rel (0) target = $region21
  $region20: #{blstm_forward.1} parent=0 // pred_region
    _
  $region21: #{blstm_forward.1} parent=0 // pred_fallthru
    _
  // Predicated region
  $region22: #{blstm_forward.1} parent=0 // pred_check
    _
  $region23: #{blstm_forward.1} parent=0 // pred_check_branch
    %27 = sbr.rel (0) target = $region25
  $region24: #{blstm_forward.1} parent=0 // pred_region
    _
  $region25: #{blstm_forward.1} parent=0 // pred_fallthru
    _
  // Predicated region
  $region26: #{blstm_forward.1} parent=0 // pred_check
    _
  $region27: #{blstm_forward.1} parent=0 // pred_check_branch
    %29 = sbr.rel (0) target = $region29
  $region28: #{blstm_forward.1} parent=0 // pred_region
    _
  $region29: #{blstm_forward.1} parent=0 // pred_fallthru
    _
  // Predicated region
  $region30: #{blstm_forward.1} parent=0 // pred_check
    _
  $region31: #{blstm_forward.1} parent=0 // pred_check_branch
    %31 = sbr.rel (0) target = $region33
  $region32: #{blstm_forward.1} parent=0 // pred_region
    _
  $region33: #{blstm_forward.1} parent=0 // pred_fallthru
    _
  // Predicated region
  $region34: #{blstm_forward.1} parent=0 // pred_check
    _
  $region35: #{blstm_forward.1} parent=0 // pred_check_branch
    %33 = sbr.rel (0) target = $region37
  $region36: #{blstm_forward.1} parent=0 // pred_region
    _
  $region37: #{blstm_forward.1} parent=0 // pred_fallthru
    _
  %v34 = vld [vmem:[%s0] sm:$0xff]
  %v35 = vld [vmem:[%s0 + $0x8] sm:$0xff]
  %v36 = vld [vmem:[%s1] sm:$0xff]
  %v37 = vld [vmem:[%s1 + $0x8] sm:$0xff]
  %v38 = vld [vmem:[%s3] sm:$0x1]
  %v40 = vperm.slane %v38, 0
  %vm42 = vcmask 130048
  %v44 = vsel %vm42, %v34, 0
  %v47 = vsel %vm42, %v35, 0
  %49 = vmatpush.msra.mxu0 0.0
  %50 = vmatpush.msra.mxu0 0.0
  %51 = vmatpush.msra.mxu0 0.0
  %52 = vmatpush.msra.mxu0 0.0
  %53 = vmatpush.msra.mxu0 0.0
  %54 = vmatpush.msra.mxu0 0.0
  %55 = vmatpush.msra.mxu0 0.0
  %56 = vmatpush.msra.mxu0 0.0
  %57 = vmatpush.msra.mxu0 0.0
  %58 = vmatpush.msra.mxu0 0.0
  %59 = vmatpush.msra.mxu0 0.0
  %60 = vmatpush.msra.mxu0 0.0
  %61 = vmatpush.msra.mxu0 0.0
  %62 = vmatpush.msra.mxu0 0.0
  %63 = vmatpush.msra.mxu0 %v37
  %64 = vmatpush.msra.mxu0 %v36
  %65 = vmatmul.f32.gmra.mxu0 %v44
  %v66 = vpop.f32.mrf.mxu0
  %v67 = vadd.f32 %v40, %v66
  %68 = vmatmul.f32.gmra.mxu0 %v47
  %v69 = vpop.f32.mrf.mxu0
  %v70 = vadd.f32 %v40, %v69
  %71 = vdwg.mxu0
  %v72 = vld [vmem:[%s2] sm:$0xff]
  %v73 = vld [vmem:[%s2 + $0x8] sm:$0xff]
  %v74 = vld [vmem:[%s2 + $0x10] sm:$0xff]
  %v75 = vld [vmem:[%s2 + $0x18] sm:$0xff]
  %vm76 = vcmask 261120
  %v78 = vsel %vm76, 0.0, 0
  %80 = vmatpush.msra.mxu0 0.0
  %81 = vmatpush.msra.mxu0 0.0
  %82 = vmatpush.msra.mxu0 0.0
  %83 = vmatpush.msra.mxu0 0.0
  %84 = vmatpush.msra.mxu0 0.0
  %85 = vmatpush.msra.mxu0 0.0
  %86 = vmatpush.msra.mxu0 0.0
  %87 = vmatpush.msra.mxu0 0.0
  %88 = vmatpush.msra.mxu0 0.0
  %89 = vmatpush.msra.mxu0 0.0
  %90 = vmatpush.msra.mxu0 0.0
  %91 = vmatpush.msra.mxu0 0.0
  %92 = vmatpush.msra.mxu0 %v75
  %93 = vmatpush.msra.mxu0 %v74
  %94 = vmatpush.msra.mxu0 %v73
  %95 = vmatpush.msra.mxu0 %v72
  %96 = vmatmul.f32.gmra.mxu0 %v78
  %v97 = vpop.f32.mrf.mxu0
  %v98 = vadd.f32 0.0, %v97
  %99 = vdwg.mxu0
  %v100 = vadd.f32 %v67, %v98
  %v101 = vxor.u32 %v100, 2147483648
  %v102 = vmul.f32 %v101, 1.442695
  %v103 = vpow.pop %v102
  %v104 = vadd.f32 %v103, 1.0
  %v105 = vrcp.pop %v104
  %v106 = vmul.f32 %v104, %v105
  %v107 = vsub.f32 1.0, %v106
  %v108 = vmul.f32 %v105, %v107
  %v109 = vadd.f32 %v105, %v108
  %vm110 = vweird.f32 %v104
  %vm111 = vweird.f32 %v105
  %vm112 = vmor %vm110, %vm111
  %v113 = vsel %vm112, %v105, %v109
  %v114 = vand.u32 2147483647, %v104
  %vm115 = vcmp.eq.f32.partialorder %v114, 8.507059e+37
  %v116 = vand.u32 %v104, 2147483648
  %v117 = vor.u32 1.1754944e-38, %v116
  %v118 = vsel %vm115, %v117, %v113
  %v119 = vmul.f32 1.0, %v118
  %v120 = vtanh.pop %v100
  %v121 = vmul.f32 %v119, 0.0
  %123 = vrot.lane.b32.xlu0 %v120, 64
  %v124 = vpop.permute.xlu0 %123
  %v126 = vmul.f32 %v119, %v124
  %128 = vrot.lane.b32.xlu0 %v126, 32
  %v129 = vpop.permute.xlu0 %128
  %v131 = vadd.f32 %v121, %v129
  %v132 = vtanh.pop %v131
  %134 = vrot.lane.b32.xlu0 %v132, 64
  %v135 = vpop.permute.xlu0 %134
  %v137 = vmul.f32 %v119, %v135
  %139 = vrot.lane.b32.xlu0 %v137, 32
  %v140 = vpop.permute.xlu0 %139
  %v141 = vsel %vm76, %v140, 0
  %143 = vmatpush.msra.mxu0 0.0
  %144 = vmatpush.msra.mxu0 0.0
  %145 = vmatpush.msra.mxu0 0.0
  %146 = vmatpush.msra.mxu0 0.0
  %147 = vmatpush.msra.mxu0 0.0
  %148 = vmatpush.msra.mxu0 0.0
  %149 = vmatpush.msra.mxu0 0.0
  %150 = vmatpush.msra.mxu0 0.0
  %151 = vmatpush.msra.mxu0 0.0
  %152 = vmatpush.msra.mxu0 0.0
  %153 = vmatpush.msra.mxu0 0.0
  %154 = vmatpush.msra.mxu0 0.0
  %155 = vmatpush.msra.mxu0 %v75
  %156 = vmatpush.msra.mxu0 %v74
  %157 = vmatpush.msra.mxu0 %v73
  %158 = vmatpush.msra.mxu0 %v72
  %159 = vmatmul.f32.gmra.mxu0 %v141
  %v160 = vpop.f32.mrf.mxu0
  %v161 = vadd.f32 0.0, %v160
  %162 = vdwg.mxu0
  %v164 = vrot.slane %v161, 6
  %v166 = vadd.f32 %v67, %v164
  %v167 = vxor.u32 %v166, 2147483648
  %v168 = vmul.f32 %v167, 1.442695
  %v169 = vpow.pop %v168
  %v170 = vadd.f32 %v169, 1.0
  %v171 = vrcp.pop %v170
  %v172 = vmul.f32 %v170, %v171
  %v173 = vsub.f32 1.0, %v172
  %v174 = vmul.f32 %v171, %v173
  %v175 = vadd.f32 %v171, %v174
  %vm176 = vweird.f32 %v170
  %vm177 = vweird.f32 %v171
  %vm178 = vmor %vm176, %vm177
  %v179 = vsel %vm178, %v171, %v175
  %v180 = vand.u32 2147483647, %v170
  %vm181 = vcmp.eq.f32.partialorder %v180, 8.507059e+37
  %v182 = vand.u32 %v170, 2147483648
  %v183 = vor.u32 1.1754944e-38, %v182
  %v184 = vsel %vm181, %v183, %v179
  %v185 = vmul.f32 1.0, %v184
  %v186 = vtanh.pop %v166
  %v188 = vrot.slane %v131, 6
  %v190 = vmul.f32 %v185, %v188
  %192 = vrot.lane.b32.xlu0 %v186, 64
  %v193 = vpop.permute.xlu0 %192
  %v195 = vmul.f32 %v185, %v193
  %197 = vrot.lane.b32.xlu0 %v195, 32
  %v198 = vpop.permute.xlu0 %197
  %v200 = vadd.f32 %v190, %v198
  %v201 = vtanh.pop %v200
  %203 = vrot.lane.b32.xlu0 %v201, 64
  %v204 = vpop.permute.xlu0 %203
  %v206 = vmul.f32 %v185, %v204
  %v208 = vrot.slane %v206, 2
  %209 = vrot.lane.b32.xlu0 %v208, 32
  %v210 = vpop.permute.xlu0 %209
  %v211 = vsel %vm76, %v210, 0
  %213 = vmatpush.msra.mxu0 0.0
  %214 = vmatpush.msra.mxu0 0.0
  %215 = vmatpush.msra.mxu0 0.0
  %216 = vmatpush.msra.mxu0 0.0
  %217 = vmatpush.msra.mxu0 0.0
  %218 = vmatpush.msra.mxu0 0.0
  %219 = vmatpush.msra.mxu0 0.0
  %220 = vmatpush.msra.mxu0 0.0
  %221 = vmatpush.msra.mxu0 0.0
  %222 = vmatpush.msra.mxu0 0.0
  %223 = vmatpush.msra.mxu0 0.0
  %224 = vmatpush.msra.mxu0 0.0
  %225 = vmatpush.msra.mxu0 %v75
  %226 = vmatpush.msra.mxu0 %v74
  %227 = vmatpush.msra.mxu0 %v73
  %228 = vmatpush.msra.mxu0 %v72
  %229 = vmatmul.f32.gmra.mxu0 %v211
  %v230 = vpop.f32.mrf.mxu0
  %v231 = vadd.f32 0.0, %v230
  %232 = vdwg.mxu0
  %v234 = vrot.slane %v231, 4
  %v236 = vadd.f32 %v67, %v234
  %v237 = vxor.u32 %v236, 2147483648
  %v238 = vmul.f32 %v237, 1.442695
  %v239 = vpow.pop %v238
  %v240 = vadd.f32 %v239, 1.0
  %v241 = vrcp.pop %v240
  %v242 = vmul.f32 %v240, %v241
  %v243 = vsub.f32 1.0, %v242
  %v244 = vmul.f32 %v241, %v243
  %v245 = vadd.f32 %v241, %v244
  %vm246 = vweird.f32 %v240
  %vm247 = vweird.f32 %v241
  %vm248 = vmor %vm246, %vm247
  %v249 = vsel %vm248, %v241, %v245
  %v250 = vand.u32 2147483647, %v240
  %vm251 = vcmp.eq.f32.partialorder %v250, 8.507059e+37
  %v252 = vand.u32 %v240, 2147483648
  %v253 = vor.u32 1.1754944e-38, %v252
  %v254 = vsel %vm251, %v253, %v249
  %v255 = vmul.f32 1.0, %v254
  %v256 = vtanh.pop %v236
  %v258 = vrot.slane %v200, 6
  %v260 = vmul.f32 %v255, %v258
  %262 = vrot.lane.b32.xlu0 %v256, 64
  %v263 = vpop.permute.xlu0 %262
  %v265 = vmul.f32 %v255, %v263
  %267 = vrot.lane.b32.xlu0 %v265, 32
  %v268 = vpop.permute.xlu0 %267
  %v270 = vadd.f32 %v260, %v268
  %v271 = vtanh.pop %v270
  %273 = vrot.lane.b32.xlu0 %v271, 64
  %v274 = vpop.permute.xlu0 %273
  %v276 = vmul.f32 %v255, %v274
  %v278 = vrot.slane %v276, 4
  %279 = vrot.lane.b32.xlu0 %v278, 32
  %v280 = vpop.permute.xlu0 %279
  %v281 = vsel %vm76, %v280, 0
  %283 = vmatpush.msra.mxu0 0.0
  %284 = vmatpush.msra.mxu0 0.0
  %285 = vmatpush.msra.mxu0 0.0
  %286 = vmatpush.msra.mxu0 0.0
  %287 = vmatpush.msra.mxu0 0.0
  %288 = vmatpush.msra.mxu0 0.0
  %289 = vmatpush.msra.mxu0 0.0
  %290 = vmatpush.msra.mxu0 0.0
  %291 = vmatpush.msra.mxu0 0.0
  %292 = vmatpush.msra.mxu0 0.0
  %293 = vmatpush.msra.mxu0 0.0
  %294 = vmatpush.msra.mxu0 0.0
  %295 = vmatpush.msra.mxu0 %v75
  %296 = vmatpush.msra.mxu0 %v74
  %297 = vmatpush.msra.mxu0 %v73
  %298 = vmatpush.msra.mxu0 %v72
  %299 = vmatmul.f32.gmra.mxu0 %v281
  %v300 = vpop.f32.mrf.mxu0
  %v301 = vadd.f32 0.0, %v300
  %302 = vdwg.mxu0
  %v304 = vrot.slane %v301, 2
  %v306 = vadd.f32 %v67, %v304
  %v307 = vxor.u32 %v306, 2147483648
  %v308 = vmul.f32 %v307, 1.442695
  %v309 = vpow.pop %v308
  %v310 = vadd.f32 %v309, 1.0
  %v311 = vrcp.pop %v310
  %v312 = vmul.f32 %v310, %v311
  %v313 = vsub.f32 1.0, %v312
  %v314 = vmul.f32 %v311, %v313
  %v315 = vadd.f32 %v311, %v314
  %vm316 = vweird.f32 %v310
  %vm317 = vweird.f32 %v311
  %vm318 = vmor %vm316, %vm317
  %v319 = vsel %vm318, %v311, %v315
  %v320 = vand.u32 2147483647, %v310
  %vm321 = vcmp.eq.f32.partialorder %v320, 8.507059e+37
  %v322 = vand.u32 %v310, 2147483648
  %v323 = vor.u32 1.1754944e-38, %v322
  %v324 = vsel %vm321, %v323, %v319
  %v325 = vmul.f32 1.0, %v324
  %v326 = vtanh.pop %v306
  %v328 = vrot.slane %v270, 6
  %v330 = vmul.f32 %v325, %v328
  %332 = vrot.lane.b32.xlu0 %v326, 64
  %v333 = vpop.permute.xlu0 %332
  %v335 = vmul.f32 %v325, %v333
  %337 = vrot.lane.b32.xlu0 %v335, 32
  %v338 = vpop.permute.xlu0 %337
  %v340 = vadd.f32 %v330, %v338
  %v341 = vtanh.pop %v340
  %343 = vrot.lane.b32.xlu0 %v341, 64
  %v344 = vpop.permute.xlu0 %343
  %v346 = vmul.f32 %v325, %v344
  %v348 = vrot.slane %v346, 6
  %349 = vrot.lane.b32.xlu0 %v348, 32
  %v350 = vpop.permute.xlu0 %349
  %v351 = vsel %vm76, %v350, 0
  %353 = vmatpush.msra.mxu0 0.0
  %354 = vmatpush.msra.mxu0 0.0
  %355 = vmatpush.msra.mxu0 0.0
  %356 = vmatpush.msra.mxu0 0.0
  %357 = vmatpush.msra.mxu0 0.0
  %358 = vmatpush.msra.mxu0 0.0
  %359 = vmatpush.msra.mxu0 0.0
  %360 = vmatpush.msra.mxu0 0.0
  %361 = vmatpush.msra.mxu0 0.0
  %362 = vmatpush.msra.mxu0 0.0
  %363 = vmatpush.msra.mxu0 0.0
  %364 = vmatpush.msra.mxu0 0.0
  %365 = vmatpush.msra.mxu0 %v75
  %366 = vmatpush.msra.mxu0 %v74
  %367 = vmatpush.msra.mxu0 %v73
  %368 = vmatpush.msra.mxu0 %v72
  %369 = vmatmul.f32.gmra.mxu0 %v351
  %v370 = vpop.f32.mrf.mxu0
  %v371 = vadd.f32 0.0, %v370
  %372 = vdwg.mxu0
  %v373 = vadd.f32 %v70, %v371
  %v374 = vxor.u32 %v373, 2147483648
  %v375 = vmul.f32 %v374, 1.442695
  %v376 = vpow.pop %v375
  %v377 = vadd.f32 %v376, 1.0
  %v378 = vrcp.pop %v377
  %v379 = vmul.f32 %v377, %v378
  %v380 = vsub.f32 1.0, %v379
  %v381 = vmul.f32 %v378, %v380
  %v382 = vadd.f32 %v378, %v381
  %vm383 = vweird.f32 %v377
  %vm384 = vweird.f32 %v378
  %vm385 = vmor %vm383, %vm384
  %v386 = vsel %vm385, %v378, %v382
  %v387 = vand.u32 2147483647, %v377
  %vm388 = vcmp.eq.f32.partialorder %v387, 8.507059e+37
  %v389 = vand.u32 %v377, 2147483648
  %v390 = vor.u32 1.1754944e-38, %v389
  %v391 = vsel %vm388, %v390, %v386
  %v392 = vmul.f32 1.0, %v391
  %v393 = vtanh.pop %v373
  %v395 = vrot.slane %v340, 6
  %v397 = vmul.f32 %v392, %v395
  %399 = vrot.lane.b32.xlu0 %v393, 64
  %v400 = vpop.permute.xlu0 %399
  %v402 = vmul.f32 %v392, %v400
  %404 = vrot.lane.b32.xlu0 %v402, 32
  %v405 = vpop.permute.xlu0 %404
  %v407 = vadd.f32 %v397, %v405
  %v408 = vtanh.pop %v407
  %410 = vrot.lane.b32.xlu0 %v408, 64
  %v411 = vpop.permute.xlu0 %410
  %v413 = vmul.f32 %v392, %v411
  %415 = vrot.lane.b32.xlu0 %v413, 32
  %v416 = vpop.permute.xlu0 %415
  %v417 = vsel %vm76, %v416, 0
  %419 = vmatpush.msra.mxu0 0.0
  %420 = vmatpush.msra.mxu0 0.0
  %421 = vmatpush.msra.mxu0 0.0
  %422 = vmatpush.msra.mxu0 0.0
  %423 = vmatpush.msra.mxu0 0.0
  %424 = vmatpush.msra.mxu0 0.0
  %425 = vmatpush.msra.mxu0 0.0
  %426 = vmatpush.msra.mxu0 0.0
  %427 = vmatpush.msra.mxu0 0.0
  %428 = vmatpush.msra.mxu0 0.0
  %429 = vmatpush.msra.mxu0 0.0
  %430 = vmatpush.msra.mxu0 0.0
  %431 = vmatpush.msra.mxu0 %v75
  %432 = vmatpush.msra.mxu0 %v74
  %433 = vmatpush.msra.mxu0 %v73
  %434 = vmatpush.msra.mxu0 %v72
  %435 = vmatmul.f32.gmra.mxu0 %v417
  %v436 = vpop.f32.mrf.mxu0
  %v437 = vadd.f32 0.0, %v436
  %438 = vdwg.mxu0
  %v440 = vrot.slane %v437, 6
  %v442 = vadd.f32 %v70, %v440
  %v443 = vxor.u32 %v442, 2147483648
  %v444 = vmul.f32 %v443, 1.442695
  %v445 = vpow.pop %v444
  %v446 = vadd.f32 %v445, 1.0
  %v447 = vrcp.pop %v446
  %v448 = vmul.f32 %v446, %v447
  %v449 = vsub.f32 1.0, %v448
  %v450 = vmul.f32 %v447, %v449
  %v451 = vadd.f32 %v447, %v450
  %vm452 = vweird.f32 %v446
  %vm453 = vweird.f32 %v447
  %vm454 = vmor %vm452, %vm453
  %v455 = vsel %vm454, %v447, %v451
  %v456 = vand.u32 2147483647, %v446
  %vm457 = vcmp.eq.f32.partialorder %v456, 8.507059e+37
  %v458 = vand.u32 %v446, 2147483648
  %v459 = vor.u32 1.1754944e-38, %v458
  %v460 = vsel %vm457, %v459, %v455
  %v461 = vmul.f32 1.0, %v460
  %v462 = vtanh.pop %v442
  %v464 = vrot.slane %v407, 6
  %v466 = vmul.f32 %v461, %v464
  %468 = vrot.lane.b32.xlu0 %v462, 64
  %v469 = vpop.permute.xlu0 %468
  %v471 = vmul.f32 %v461, %v469
  %473 = vrot.lane.b32.xlu0 %v471, 32
  %v474 = vpop.permute.xlu0 %473
  %v476 = vadd.f32 %v466, %v474
  %v477 = vtanh.pop %v476
  %479 = vrot.lane.b32.xlu0 %v477, 64
  %v480 = vpop.permute.xlu0 %479
  %v482 = vmul.f32 %v461, %v480
  %v484 = vrot.slane %v482, 2
  %485 = vrot.lane.b32.xlu0 %v484, 32
  %v486 = vpop.permute.xlu0 %485
  %v487 = vsel %vm76, %v486, 0
  %489 = vmatpush.msra.mxu0 0.0
  %490 = vmatpush.msra.mxu0 0.0
  %491 = vmatpush.msra.mxu0 0.0
  %492 = vmatpush.msra.mxu0 0.0
  %493 = vmatpush.msra.mxu0 0.0
  %494 = vmatpush.msra.mxu0 0.0
  %495 = vmatpush.msra.mxu0 0.0
  %496 = vmatpush.msra.mxu0 0.0
  %497 = vmatpush.msra.mxu0 0.0
  %498 = vmatpush.msra.mxu0 0.0
  %499 = vmatpush.msra.mxu0 0.0
  %500 = vmatpush.msra.mxu0 0.0
  %501 = vmatpush.msra.mxu0 %v75
  %502 = vmatpush.msra.mxu0 %v74
  %503 = vmatpush.msra.mxu0 %v73
  %504 = vmatpush.msra.mxu0 %v72
  %505 = vmatmul.f32.gmra.mxu0 %v487
  %v506 = vpop.f32.mrf.mxu0
  %v507 = vadd.f32 0.0, %v506
  %508 = vdwg.mxu0
  %v510 = vrot.slane %v507, 4
  %v512 = vadd.f32 %v70, %v510
  %v513 = vxor.u32 %v512, 2147483648
  %v514 = vmul.f32 %v513, 1.442695
  %v515 = vpow.pop %v514
  %v516 = vadd.f32 %v515, 1.0
  %v517 = vrcp.pop %v516
  %v518 = vmul.f32 %v516, %v517
  %v519 = vsub.f32 1.0, %v518
  %v520 = vmul.f32 %v517, %v519
  %v521 = vadd.f32 %v517, %v520
  %vm522 = vweird.f32 %v516
  %vm523 = vweird.f32 %v517
  %vm524 = vmor %vm522, %vm523
  %v525 = vsel %vm524, %v517, %v521
  %v526 = vand.u32 2147483647, %v516
  %vm527 = vcmp.eq.f32.partialorder %v526, 8.507059e+37
  %v528 = vand.u32 %v516, 2147483648
  %v529 = vor.u32 1.1754944e-38, %v528
  %v530 = vsel %vm527, %v529, %v525
  %v531 = vmul.f32 1.0, %v530
  %v532 = vtanh.pop %v512
  %v534 = vrot.slane %v476, 6
  %v536 = vmul.f32 %v531, %v534
  %538 = vrot.lane.b32.xlu0 %v532, 64
  %v539 = vpop.permute.xlu0 %538
  %v541 = vmul.f32 %v531, %v539
  %543 = vrot.lane.b32.xlu0 %v541, 32
  %v544 = vpop.permute.xlu0 %543
  %v546 = vadd.f32 %v536, %v544
  %v547 = vtanh.pop %v546
  %549 = vrot.lane.b32.xlu0 %v547, 64
  %v550 = vpop.permute.xlu0 %549
  %v552 = vmul.f32 %v531, %v550
  %v554 = vrot.slane %v552, 4
  %555 = vrot.lane.b32.xlu0 %v554, 32
  %v556 = vpop.permute.xlu0 %555
  %v557 = vsel %vm76, %v556, 0
  %559 = vmatpush.msra.mxu0 0.0
  %560 = vmatpush.msra.mxu0 0.0
  %561 = vmatpush.msra.mxu0 0.0
  %562 = vmatpush.msra.mxu0 0.0
  %563 = vmatpush.msra.mxu0 0.0
  %564 = vmatpush.msra.mxu0 0.0
  %565 = vmatpush.msra.mxu0 0.0
  %566 = vmatpush.msra.mxu0 0.0
  %567 = vmatpush.msra.mxu0 0.0
  %568 = vmatpush.msra.mxu0 0.0
  %569 = vmatpush.msra.mxu0 0.0
  %570 = vmatpush.msra.mxu0 0.0
  %571 = vmatpush.msra.mxu0 %v75
  %572 = vmatpush.msra.mxu0 %v74
  %573 = vmatpush.msra.mxu0 %v73
  %574 = vmatpush.msra.mxu0 %v72
  %575 = vmatmul.f32.gmra.mxu0 %v557
  %v576 = vpop.f32.mrf.mxu0
  %v577 = vadd.f32 0.0, %v576
  %578 = vdwg.mxu0
  %v580 = vrot.slane %v577, 2
  %v582 = vadd.f32 %v70, %v580
  %v583 = vxor.u32 %v582, 2147483648
  %v584 = vmul.f32 %v583, 1.442695
  %v585 = vpow.pop %v584
  %v586 = vadd.f32 %v585, 1.0
  %v587 = vrcp.pop %v586
  %v588 = vmul.f32 %v586, %v587
  %v589 = vsub.f32 1.0, %v588
  %v590 = vmul.f32 %v587, %v589
  %v591 = vadd.f32 %v587, %v590
  %vm592 = vweird.f32 %v586
  %vm593 = vweird.f32 %v587
  %vm594 = vmor %vm592, %vm593
  %v595 = vsel %vm594, %v587, %v591
  %v596 = vand.u32 2147483647, %v586
  %vm597 = vcmp.eq.f32.partialorder %v596, 8.507059e+37
  %v598 = vand.u32 %v586, 2147483648
  %v599 = vor.u32 1.1754944e-38, %v598
  %v600 = vsel %vm597, %v599, %v595
  %v601 = vmul.f32 1.0, %v600
  %v602 = vtanh.pop %v582
  %v604 = vrot.slane %v546, 6
  %v606 = vmul.f32 %v601, %v604
  %608 = vrot.lane.b32.xlu0 %v602, 64
  %v609 = vpop.permute.xlu0 %608
  %v611 = vmul.f32 %v601, %v609
  %613 = vrot.lane.b32.xlu0 %v611, 32
  %v614 = vpop.permute.xlu0 %613
  %v616 = vadd.f32 %v606, %v614
  %v617 = vtanh.pop %v616
  %619 = vrot.lane.b32.xlu0 %v617, 64
  %v620 = vpop.permute.xlu0 %619
  %v622 = vmul.f32 %v601, %v620
  %v623 = vld [vmem:[%s0 + $0xe] sm:$0x3]
  %v624 = vld [vmem:[%s4] sm:$0xff]
  %v625 = vld [vmem:[%s4 + $0x8] sm:$0xff]
  %v626 = vld [vmem:[%s5] sm:$0x1]
  %v628 = vperm.slane %v626, 0
  %v631 = vsel %vm42, %v623, 0
  %633 = vmatpush.msra.mxu0 0.0
  %634 = vmatpush.msra.mxu0 0.0
  %635 = vmatpush.msra.mxu0 0.0
  %636 = vmatpush.msra.mxu0 0.0
  %637 = vmatpush.msra.mxu0 0.0
  %638 = vmatpush.msra.mxu0 0.0
  %639 = vmatpush.msra.mxu0 0.0
  %640 = vmatpush.msra.mxu0 0.0
  %641 = vmatpush.msra.mxu0 0.0
  %642 = vmatpush.msra.mxu0 0.0
  %643 = vmatpush.msra.mxu0 0.0
  %644 = vmatpush.msra.mxu0 0.0
  %645 = vmatpush.msra.mxu0 0.0
  %646 = vmatpush.msra.mxu0 0.0
  %647 = vmatpush.msra.mxu0 %v625
  %648 = vmatpush.msra.mxu0 %v624
  %649 = vmatmul.f32.gmra.mxu0 %v631
  %v650 = vpop.f32.mrf.mxu0
  %v651 = vadd.f32 %v628, %v650
  %652 = vdwg.mxu0
  %v653 = vxor.u32 %v651, 2147483648
  %v654 = vmul.f32 %v653, 1.442695
  %v655 = vpow.pop %v654
  %v656 = vadd.f32 %v655, 1.0
  %v657 = vrcp.pop %v656
  %v658 = vmul.f32 %v656, %v657
  %v659 = vsub.f32 1.0, %v658
  %v660 = vmul.f32 %v657, %v659
  %v661 = vadd.f32 %v657, %v660
  %vm662 = vweird.f32 %v656
  %vm663 = vweird.f32 %v657
  %vm664 = vmor %vm662, %vm663
  %v665 = vsel %vm664, %v657, %v661
  %v666 = vand.u32 2147483647, %v656
  %vm667 = vcmp.eq.f32.partialorder %v666, 8.507059e+37
  %v668 = vand.u32 %v656, 2147483648
  %v669 = vor.u32 1.1754944e-38, %v668
  %v670 = vsel %vm667, %v669, %v665
  %v671 = vmul.f32 1.0, %v670
  %v672 = vtanh.pop %v651
  %674 = vrot.lane.b32.xlu0 %v672, 64
  %v675 = vpop.permute.xlu0 %674
  %v677 = vmul.f32 %v671, %v675
  %v678 = vtanh.pop %v677
  %680 = vrot.lane.b32.xlu0 %v678, 96
  %v681 = vpop.permute.xlu0 %680
  %v683 = vmul.f32 %v671, %v681
  %v684 = vld [vmem:[%s6] sm:$0xff]
  %v685 = vld [vmem:[%s6 + $0x8] sm:$0xff]
  %v686 = vld [vmem:[%s6 + $0x10] sm:$0xff]
  %v687 = vld [vmem:[%s6 + $0x18] sm:$0xff]
  %v688 = vld [vmem:[%s7] sm:$0xff]
  %v689 = vld [vmem:[%s7 + $0x8] sm:$0xff]
  %v690 = vld [vmem:[%s7 + $0x10] sm:$0xff]
  %v691 = vld [vmem:[%s7 + $0x18] sm:$0xff]
  %693 = vrot.lane.b32.xlu0 %v683, 32
  %v694 = vpop.permute.xlu0 %693
  %v695 = vsel %vm76, %v694, 0
  %697 = vmatpush.msra.mxu0 0.0
  %698 = vmatpush.msra.mxu0 0.0
  %699 = vmatpush.msra.mxu0 0.0
  %700 = vmatpush.msra.mxu0 0.0
  %701 = vmatpush.msra.mxu0 0.0
  %702 = vmatpush.msra.mxu0 0.0
  %703 = vmatpush.msra.mxu0 0.0
  %704 = vmatpush.msra.mxu0 0.0
  %705 = vmatpush.msra.mxu0 0.0
  %706 = vmatpush.msra.mxu0 0.0
  %707 = vmatpush.msra.mxu0 0.0
  %708 = vmatpush.msra.mxu0 0.0
  %709 = vmatpush.msra.mxu0 %v691
  %710 = vmatpush.msra.mxu0 %v690
  %711 = vmatpush.msra.mxu0 %v689
  %712 = vmatpush.msra.mxu0 %v688
  %713 = vmatmul.f32.gmra.mxu0 %v695
  %v714 = vpop.f32.mrf.mxu0
  %v715 = vadd.f32 0.0, %v714
  %716 = vdwg.mxu0
  %v718 = vrot.slane %v622, 6
  %719 = vrot.lane.b32.xlu0 %v718, 32
  %v720 = vpop.permute.xlu0 %719
  %v721 = vsel %vm76, %v720, 0
  %723 = vmatpush.msra.mxu0 0.0
  %724 = vmatpush.msra.mxu0 0.0
  %725 = vmatpush.msra.mxu0 0.0
  %726 = vmatpush.msra.mxu0 0.0
  %727 = vmatpush.msra.mxu0 0.0
  %728 = vmatpush.msra.mxu0 0.0
  %729 = vmatpush.msra.mxu0 0.0
  %730 = vmatpush.msra.mxu0 0.0
  %731 = vmatpush.msra.mxu0 0.0
  %732 = vmatpush.msra.mxu0 0.0
  %733 = vmatpush.msra.mxu0 0.0
  %734 = vmatpush.msra.mxu0 0.0
  %735 = vmatpush.msra.mxu0 %v687
  %736 = vmatpush.msra.mxu0 %v686
  %737 = vmatpush.msra.mxu0 %v685
  %738 = vmatpush.msra.mxu0 %v684
  %739 = vmatmul.f32.gmra.mxu0 %v721
  %v740 = vpop.f32.mrf.mxu0
  %v741 = vadd.f32 %v715, %v740
  %742 = vdwg.mxu0
  %v743 = vld [vmem:[#allocation2] sm:$0x1]
  %v745 = vperm.slane %v743, 0
  %v747 = vadd.f32 %v741, %v745
  %vm748 = vcmask 1024
  %749 = vst.msk [vmem:[%s9] sm:$0x3] %vm748, %v747
  // Predicated region
  $region38: #{blstm_forward.1} parent=0 // pred_check
    _
  $region39: #{blstm_forward.1} parent=0 // pred_check_branch
    %751 = sbr.rel (0) target = $region41
  $region40: #{blstm_forward.1} parent=0 // pred_region
    _
  $region41: #{blstm_forward.1} parent=0 // pred_fallthru
    _
  // Predicated region
  $region42: #{blstm_forward.1} parent=0 // pred_check
    _
  $region43: #{blstm_forward.1} parent=0 // pred_check_branch
    %753 = sbr.rel (0) target = $region45
  $region44: #{blstm_forward.1} parent=0 // pred_region
    _
  $region45: #{blstm_forward.1} parent=0 // pred_fallthru
    _

</llo_original>
